<compile_context>
chip_gen: v7x
topology: tpu7x:2x2x1
jax: 0.10.0
libtpu: 0.0.40
codegen_flags: <defaults>
</compile_context>

<pallas_src>
import functools

import jax
import jax.numpy as jnp
from jax import lax
from jax.experimental import pallas as pl
from jax.experimental.pallas import tpu as pltpu


def _cls_head_kernel(x_ref, w_ref, b_ref, o_ref, acc_ref, *, seq_len, s_tile):
    # x_ref: (B_t, S_t, D) native dtype   w_ref: (C_pad, D)   b_ref: (1, C_pad)
    # o_ref: (B_t, C_pad)                 acc_ref: (B_t, D) f32 scratch
    s = pl.program_id(1)

    @pl.when(s == 0)
    def _():
        acc_ref[...] = jnp.zeros_like(acc_ref)

    x = x_ref[...]  # keep native dtype; accumulate in f32 below
    if seq_len % s_tile != 0:
        # Mask out-of-range rows of the (padded) last seq tile before summing.
        ids = lax.broadcasted_iota(jnp.int32, (s_tile, 1), 0) + s * s_tile
        x = jnp.where((ids < seq_len)[None, :, :], x, jnp.zeros_like(x))

    # Running sum over the sequence axis, accumulated in f32.
    acc_ref[...] += jnp.sum(x, axis=1, dtype=jnp.float32)

    @pl.when(s == pl.num_programs(1) - 1)
    def _():
        pooled = acc_ref[...] * jnp.float32(1.0 / seq_len)        # (B_t, D) f32
        w = w_ref[...]                                            # (C_pad, D)
        out = lax.dot_general(
            pooled.astype(w.dtype), w,
            dimension_numbers=(((1,), (1,)), ((), ())),           # contract D with D
            preferred_element_type=jnp.float32)                   # (B_t, C_pad)
        out = out + b_ref[...].astype(jnp.float32)
        o_ref[...] = out.astype(o_ref.dtype)


def classification_head(x, weight, bias):
    """Pallas equivalent of ClassificationHead.forward.

    x:      (B, D) or (B, S, D)
    weight: (C, D)   (PyTorch nn.Linear convention)
    bias:   (C,)
    returns (B, C)
    """
    if x.ndim == 2:
        x = x[:, None, :]  # mean over singleton seq axis is a no-op
    assert x.ndim == 3, "expected 2-D or 3-D input"
    B, S, D = x.shape
    C = weight.shape[0]

    # Lane-dense output: pad num_classes up to a multiple of 128 (zeros).
    c_pad = pl.cdiv(C, 128) * 128
    w_pad = jnp.pad(weight, ((0, c_pad - C), (0, 0)))          # (C_pad, D)
    b_pad = jnp.pad(bias, (0, c_pad - C)).reshape(1, c_pad)    # (1, C_pad)

    itemsize = x.dtype.itemsize

    # Batch tile: whole batch when small, else 128 rows (multiple of 8).
    b_tile = B if B <= 128 else 128

    # Seq tile: budget ~8 MiB per pipeline buffer of x; sublane-aligned
    # (multiple of 8 for 32-bit, 16 for 16-bit dtypes); full S if it fits.
    sub = 8 if itemsize >= 4 else 16
    s_budget = (8 * 1024 * 1024) // max(1, b_tile * D * itemsize)
    if s_budget >= S:
        s_tile = S
    else:
        s_tile = max(sub, (s_budget // sub) * sub)

    grid = (pl.cdiv(B, b_tile), pl.cdiv(S, s_tile))

    # This op is HBM-bandwidth-bound; give XLA's scheduler the real picture.
    bytes_accessed = (x.size * itemsize
                      + w_pad.size * w_pad.dtype.itemsize
                      + b_pad.size * b_pad.dtype.itemsize
                      + B * c_pad * itemsize)
    cost = pl.CostEstimate(flops=B * S * D + 2 * B * D * c_pad,
                           transcendentals=0,
                           bytes_accessed=bytes_accessed)

    # VMEM budget: x double-buffer + resident weight/bias + output block + accumulator.
    vmem_est = (2 * b_tile * s_tile * D * itemsize
                + 2 * w_pad.size * w_pad.dtype.itemsize
                + 2 * b_pad.size * b_pad.dtype.itemsize
                + 2 * b_tile * c_pad * itemsize
                + b_tile * D * 4)
    vmem_limit = int(min(max(2 * vmem_est, 4 << 20), 48 << 20))

    kernel = functools.partial(_cls_head_kernel, seq_len=S, s_tile=s_tile)

    out_padded = pl.pallas_call(
        kernel,
        out_shape=jax.ShapeDtypeStruct((B, c_pad), x.dtype),
        grid_spec=pltpu.PrefetchScalarGridSpec(
            num_scalar_prefetch=0,
            grid=grid,
            in_specs=[
                pl.BlockSpec((b_tile, s_tile, D), lambda b, s: (b, s, 0)),  # x
                pl.BlockSpec((c_pad, D), lambda b, s: (0, 0)),              # weight (resident)
                pl.BlockSpec((1, c_pad), lambda b, s: (0, 0)),              # bias   (resident)
            ],
            out_specs=pl.BlockSpec((b_tile, c_pad), lambda b, s: (b, 0)),
            scratch_shapes=[pltpu.VMEM((b_tile, D), jnp.float32)],
        ),
        compiler_params=pltpu.CompilerParams(
            dimension_semantics=("parallel", "arbitrary"),
            vmem_limit_bytes=vmem_limit,
        ),
        cost_estimate=cost,
    )(x, w_pad, b_pad)

    return out_padded[:, :C]


def _reference(x, weight, bias):
    if x.ndim == 3:
        x = x.mean(axis=1)
    return x @ weight.T + bias


if __name__ == "__main__":
    key = jax.random.PRNGKey(0)
    k_x, k_w, k_b, k_x2 = jax.random.split(key, 4)

    batch, seq, hidden, num_classes = 2, 8, 32, 10

    # Deterministic parameter init (nn.Linear shapes: (C, D), (C,))
    bound = 1.0 / (hidden ** 0.5)
    weight = jax.random.uniform(k_w, (num_classes, hidden),
                                minval=-bound, maxval=bound, dtype=jnp.float32)
    bias = jax.random.uniform(k_b, (num_classes,),
                              minval=-bound, maxval=bound, dtype=jnp.float32)

    # 3-D input path (mean over seq, then fc)
    x3 = jax.random.normal(k_x, (batch, seq, hidden), dtype=jnp.float32)
    out3 = jax.block_until_ready(classification_head(x3, weight, bias))
    ref3 = _reference(x3, weight, bias)
    assert out3.shape == (batch, num_classes)
    assert jnp.allclose(out3, ref3, atol=1e-4, rtol=1e-4)

    # 2-D input path (fc only)
    x2 = jax.random.normal(k_x2, (batch, hidden), dtype=jnp.float32)
    out2 = jax.block_until_ready(classification_head(x2, weight, bias))
    ref2 = _reference(x2, weight, bias)
    assert out2.shape == (batch, num_classes)
    assert jnp.allclose(out2, ref2, atol=1e-4, rtol=1e-4)

    print("KERNEL_OK")
</pallas_src>

<mosaic_0001>
module attributes {stable_mosaic.version = 11 : i64} {
  func.func @_cls_head_kernel(%arg0: i32, %arg1: i32, %arg2: memref<2x8x32xf32, #tpu.memory_space<vmem>>, %arg3: memref<128x32xf32, #tpu.memory_space<vmem>>, %arg4: memref<1x128xf32, #tpu.memory_space<vmem>>, %arg5: memref<2x128xf32, #tpu.memory_space<vmem>>, %arg6: memref<2x32xf32, #tpu.memory_space<vmem>>) attributes {dimension_semantics = [#tpu.dimension_semantics<parallel>, #tpu.dimension_semantics<arbitrary>], iteration_bounds = array<i64: 1, 1>, scalar_prefetch = 0 : i64, scratch_operands = 1 : i64, tpu.core_type = #tpu.core_type<tc>, window_params = [{transform_indices = @transform_0, window_bounds = array<i64: 2, 8, 32>}, {pipeline_mode = #tpu.pipeline_mode<synchronous>, transform_indices = @transform_1, window_bounds = array<i64: 128, 32>}, {pipeline_mode = #tpu.pipeline_mode<synchronous>, transform_indices = @transform_2, window_bounds = array<i64: 1, 128>}, {transform_indices = @transform_3, window_bounds = array<i64: 2, 128>}]} {
    %c0_i32 = arith.constant 0 : i32
    %0 = arith.cmpi eq, %arg1, %c0_i32 : i32
    %1 = arith.extui %0 : i1 to i32
    %c0_i32_0 = arith.constant 0 : i32
    %2 = arith.cmpi ne, %1, %c0_i32_0 : i32
    scf.if %2 {
      %cst_9 = arith.constant 0.000000e+00 : f32
      %11 = vector.broadcast %cst_9 : f32 to vector<2x32xf32>
      %c0_10 = arith.constant 0 : index
      %c0_11 = arith.constant 0 : index
      %12 = vector.load %arg6[%c0_10, %c0_11] : memref<2x32xf32, #tpu.memory_space<vmem>>, vector<2x32xf32>
      tpu.vector_store %arg6[%c0_10, %c0_11], %11 {strides = array<i32>} : memref<2x32xf32, #tpu.memory_space<vmem>>, vector<2x32xf32>,
    } else {
    }
    %c0 = arith.constant 0 : index
    %c0_1 = arith.constant 0 : index
    %c0_2 = arith.constant 0 : index
    %3 = vector.load %arg2[%c0, %c0_1, %c0_2] : memref<2x8x32xf32, #tpu.memory_space<vmem>>, vector<2x8x32xf32>
    %c0_3 = arith.constant 0 : index
    %c0_4 = arith.constant 0 : index
    %4 = vector.load %arg6[%c0_3, %c0_4] : memref<2x32xf32, #tpu.memory_space<vmem>>, vector<2x32xf32>
    %cst = arith.constant dense<0.000000e+00> : vector<2x32xf32>
    %5 = vector.multi_reduction <add>, %3, %cst [1] : vector<2x8x32xf32> to vector<2x32xf32>
    %6 = arith.addf %4, %5 : vector<2x32xf32>
    %c0_5 = arith.constant 0 : index
    %c0_6 = arith.constant 0 : index
    %7 = vector.load %arg6[%c0_5, %c0_6] : memref<2x32xf32, #tpu.memory_space<vmem>>, vector<2x32xf32>
    tpu.vector_store %arg6[%c0_5, %c0_6], %6 {strides = array<i32>} : memref<2x32xf32, #tpu.memory_space<vmem>>, vector<2x32xf32>,
    %c0_i32_7 = arith.constant 0 : i32
    %8 = arith.cmpi eq, %arg1, %c0_i32_7 : i32
    %9 = arith.extui %8 : i1 to i32
    %c0_i32_8 = arith.constant 0 : i32
    %10 = arith.cmpi ne, %9, %c0_i32_8 : i32
    scf.if %10 {
      %c0_9 = arith.constant 0 : index
      %c0_10 = arith.constant 0 : index
      %11 = vector.load %arg6[%c0_9, %c0_10] : memref<2x32xf32, #tpu.memory_space<vmem>>, vector<2x32xf32>
      %cst_11 = arith.constant 1.250000e-01 : f32
      %12 = vector.broadcast %cst_11 : f32 to vector<2x32xf32>
      %13 = arith.mulf %11, %12 : vector<2x32xf32>
      %c0_12 = arith.constant 0 : index
      %c0_13 = arith.constant 0 : index
      %14 = vector.load %arg3[%c0_12, %c0_13] : memref<128x32xf32, #tpu.memory_space<vmem>>, vector<128x32xf32>
      %cst_14 = arith.constant dense<0.000000e+00> : vector<2x128xf32>
      %15 = tpu.matmul %13, %14, %cst_14 {dimension_numbers = #tpu.dot_dimension_numbers<[1], [1], [0], [0], [0, 0, 1, 0], [], []>} : vector<2x32xf32>, vector<128x32xf32>, vector<2x128xf32> -> vector<2x128xf32>
      %c0_15 = arith.constant 0 : index
      %c0_16 = arith.constant 0 : index
      %16 = vector.load %arg4[%c0_15, %c0_16] : memref<1x128xf32, #tpu.memory_space<vmem>>, vector<1x128xf32>
      %17 = vector.broadcast %16 : vector<1x128xf32> to vector<2x128xf32>
      %18 = arith.addf %15, %17 : vector<2x128xf32>
      %c0_17 = arith.constant 0 : index
      %c0_18 = arith.constant 0 : index
      %19 = vector.load %arg5[%c0_17, %c0_18] : memref<2x128xf32, #tpu.memory_space<vmem>>, vector<2x128xf32>
      tpu.vector_store %arg5[%c0_17, %c0_18], %18 {strides = array<i32>} : memref<2x128xf32, #tpu.memory_space<vmem>>, vector<2x128xf32>,
    } else {
    }
    return
  }
  func.func @transform_0(%arg0: i32, %arg1: i32) -> (i32, i32, i32) {
    %c0_i32 = arith.constant 0 : i32
    %c0_i32_0 = arith.constant 0 : i32
    return %arg0, %arg1, %c0_i32 : i32, i32, i32
  }
  func.func @transform_1(%arg0: i32, %arg1: i32) -> (i32, i32) {
    %c0_i32 = arith.constant 0 : i32
    %c0_i32_0 = arith.constant 0 : i32
    %c0_i32_1 = arith.constant 0 : i32
    return %c0_i32, %c0_i32_0 : i32, i32
  }
  func.func @transform_2(%arg0: i32, %arg1: i32) -> (i32, i32) {
    %c0_i32 = arith.constant 0 : i32
    %c0_i32_0 = arith.constant 0 : i32
    %c0_i32_1 = arith.constant 0 : i32
    return %c0_i32, %c0_i32_0 : i32, i32
  }
  func.func @transform_3(%arg0: i32, %arg1: i32) -> (i32, i32) {
    %c0_i32 = arith.constant 0 : i32
    %c0_i32_0 = arith.constant 0 : i32
    return %arg0, %c0_i32 : i32, i32
  }
}

</mosaic_0001>

<llo_original>
// kernel: tpu_custom_call.1
$region0: #{tpu_custom_call.1}
  #allocation0 [shape = 'u32[]', space=smem, size = 0x4, offset = 0x4, fixed_abs, tag = 'smem constant byte address 0x4 - core index']
  #allocation1 [shape = 'u32[144,128]{1,0:T(1,128)}', space=vmem, size = 0x12000, scoped, tag = 'internal scratch']
  #allocation2 [shape = 'f32[2,32]{1,0:T(2,128)}', space=vmem, size = 0x400, scoped, tag = 'scratch operand']
  %s0 = inlined_call_operand.vmem [shape: f32[2,8,32], index: 0, kind: input, shape index: {}]
  %s1 = inlined_call_operand.vmem [shape: f32[128,32], index: 1, kind: input, shape index: {}]
  %s2 = inlined_call_operand.vmem [shape: f32[1,128], index: 2, kind: input, shape index: {}]
  %s3 = inlined_call_operand.hbm [shape: f32[2,128], index: 3, kind: output, shape index: {}]
  %s4 = sld [smem:[#allocation0]]
  $region30: #{tpu_custom_call.1} parent=0
    _
  %s6 = ssub.s32 1, %s4
  %s7 = scalar_select 0, %s6, %s4
  $region1: #{tpu_custom_call.1} parent=0
    #allocation3 [shape = 'u8[1024]{0}', space=vmem, size = 0x400, scoped, tag = 'output window, operand 0, single buffered']
    #allocation4 [shape = 's32[1]{0}', space=sflag, size = 0x4, scoped, tag = 'scoped memory for tpu_custom_call.1']
    %8 = vsyncpa [#allocation4], 0
    // Predicated region
    $region2: #{tpu_custom_call.1} parent=1 // pred_check
      _
    $region3: #{tpu_custom_call.1} parent=1 // pred_check_branch
      %10 = sbr.rel (0) target = $region5
    $region4: #{tpu_custom_call.1} parent=1 // pred_region
      _
    $region5: #{tpu_custom_call.1} parent=1 // pred_fallthru
      _
    // Predicated region
    $region6: #{tpu_custom_call.1} parent=1 // pred_check
      _
    $region7: #{tpu_custom_call.1} parent=1 // pred_check_branch
      %12 = sbr.rel (0) target = $region9
    $region8: #{tpu_custom_call.1} parent=1 // pred_region
      _
    $region9: #{tpu_custom_call.1} parent=1 // pred_fallthru
      _
    // Predicated region
    $region10: #{tpu_custom_call.1} parent=1 // pred_check
      _
    $region11: #{tpu_custom_call.1} parent=1 // pred_check_branch
      %14 = sbr.rel (0) target = $region13
    $region12: #{tpu_custom_call.1} parent=1 // pred_region
      _
    $region13: #{tpu_custom_call.1} parent=1 // pred_fallthru
      _
    %p15 = scmp.eq.s32.totalorder 0, 0
    // Predicated region
    $region14: #{tpu_custom_call.1} parent=1 // pred_check
      %p16 = pneg %p15
    $region15: #{tpu_custom_call.1} parent=1 // pred_check_branch
      %18 = sbr.rel (%p16) target = $region17
    $region16: #{tpu_custom_call.1} parent=1 // pred_region
      %vm19 = vcmask 254976
      %20 = vst.msk [vmem:[#allocation2] sm:$0x3] %vm19, 0.0
    $region17: #{tpu_custom_call.1} parent=1 // pred_fallthru
      _
    %v21 = vld [vmem:[%s0] sm:$0xff]
    %v22 = vld [vmem:[%s0 + $0x8] sm:$0xff]
    %v23 = vld [vmem:[#allocation2] sm:$0x3]
    %vm24 = vcmask 261120
    %v25 = vsel %vm24, %v21, 0.0
    %v26 = vrot.slane %v25, 4
    %v27 = vadd.f32 %v25, %v26
    %v28 = vrot.slane %v27, 2
    %v29 = vadd.f32 %v27, %v28
    %v30 = vrot.slane %v29, 1
    %v31 = vadd.f32 %v29, %v30
    %v32 = vsel %vm24, %v22, 0.0
    %v33 = vrot.slane %v32, 4
    %v34 = vadd.f32 %v32, %v33
    %v35 = vrot.slane %v34, 2
    %v36 = vadd.f32 %v34, %v35
    %v37 = vrot.slane %v36, 1
    %v38 = vadd.f32 %v36, %v37
    %vm41 = vcmask 1041409
    %v42 = vsel %vm41, %v38, %v31
    %v44 = vadd.f32 %v23, %v42
    %vm45 = vcmask 254976
    %46 = vst.msk [vmem:[#allocation2] sm:$0x3] %vm45, %v44
    // Predicated region
    $region18: #{tpu_custom_call.1} parent=1 // pred_check
      %p47 = pneg %p15
    $region19: #{tpu_custom_call.1} parent=1 // pred_check_branch
      %49 = sbr.rel (%p47) target = $region21
    $region20: #{tpu_custom_call.1} parent=1 // pred_region
      %v50 = vld [vmem:[#allocation2] sm:$0x3]
      %v51 = vmul.f32 %v50, 0.125
      %v52 = vld [vmem:[%s1] sm:$0xff]
      %v53 = vld [vmem:[%s1 + $0x8] sm:$0xff]
      %v54 = vld [vmem:[%s1 + $0x10] sm:$0xff]
      %v55 = vld [vmem:[%s1 + $0x18] sm:$0xff]
      %v56 = vld [vmem:[%s1 + $0x20] sm:$0xff]
      %v57 = vld [vmem:[%s1 + $0x28] sm:$0xff]
      %v58 = vld [vmem:[%s1 + $0x30] sm:$0xff]
      %v59 = vld [vmem:[%s1 + $0x38] sm:$0xff]
      %v60 = vld [vmem:[%s1 + $0x40] sm:$0xff]
      %v61 = vld [vmem:[%s1 + $0x48] sm:$0xff]
      %v62 = vld [vmem:[%s1 + $0x50] sm:$0xff]
      %v63 = vld [vmem:[%s1 + $0x58] sm:$0xff]
      %v64 = vld [vmem:[%s1 + $0x60] sm:$0xff]
      %v65 = vld [vmem:[%s1 + $0x68] sm:$0xff]
      %v66 = vld [vmem:[%s1 + $0x70] sm:$0xff]
      %v67 = vld [vmem:[%s1 + $0x78] sm:$0xff]
      %v68 = vld [vmem:[%s2] sm:$0x1]
      %v70 = vlaneseq
      %v71 = vshrl.u32 %v70, 7
      %v72 = vsub.s32 0, %v71
      %v73 = vrot.slane %v68, %v72
      %v76 = vsel %vm24, %v51, 0
      %v79 = vsel %vm24, %v52, 0
      %v82 = vsel %vm24, %v53, 0
      %v85 = vsel %vm24, %v54, 0
      %v88 = vsel %vm24, %v55, 0
      %v91 = vsel %vm24, %v56, 0
      %v94 = vsel %vm24, %v57, 0
      %v97 = vsel %vm24, %v58, 0
      %v100 = vsel %vm24, %v59, 0
      %v103 = vsel %vm24, %v60, 0
      %v106 = vsel %vm24, %v61, 0
      %v109 = vsel %vm24, %v62, 0
      %v112 = vsel %vm24, %v63, 0
      %v115 = vsel %vm24, %v64, 0
      %v118 = vsel %vm24, %v65, 0
      %v121 = vsel %vm24, %v66, 0
      %v124 = vsel %vm24, %v67, 0
      %126 = vmatprep.subr.mxu0 0.0
      %127 = vmatpush1.xpose.msra.mxu0 %v79
      %128 = vmatprep.subr.mxu0 0.0
      %129 = vmatpush1.xpose.msra.mxu0 %v82
      %130 = vmatprep.subr.mxu0 0.0
      %131 = vmatpush1.xpose.msra.mxu0 %v85
      %132 = vmatprep.subr.mxu0 0.0
      %133 = vmatpush1.xpose.msra.mxu0 %v88
      %134 = vmatprep.subr.mxu0 0.0
      %135 = vmatpush1.xpose.msra.mxu0 %v91
      %136 = vmatprep.subr.mxu0 0.0
      %137 = vmatpush1.xpose.msra.mxu0 %v94
      %138 = vmatprep.subr.mxu0 0.0
      %139 = vmatpush1.xpose.msra.mxu0 %v97
      %140 = vmatprep.subr.mxu0 0.0
      %141 = vmatpush1.xpose.msra.mxu0 %v100
      %142 = vmatprep.subr.mxu0 0.0
      %143 = vmatpush1.xpose.msra.mxu0 %v103
      %144 = vmatprep.subr.mxu0 0.0
      %145 = vmatpush1.xpose.msra.mxu0 %v106
      %146 = vmatprep.subr.mxu0 0.0
      %147 = vmatpush1.xpose.msra.mxu0 %v109
      %148 = vmatprep.subr.mxu0 0.0
      %149 = vmatpush1.xpose.msra.mxu0 %v112
      %150 = vmatprep.subr.mxu0 0.0
      %151 = vmatpush1.xpose.msra.mxu0 %v115
      %152 = vmatprep.subr.mxu0 0.0
      %153 = vmatpush1.xpose.msra.mxu0 %v118
      %154 = vmatprep.subr.mxu0 0.0
      %155 = vmatpush1.xpose.msra.mxu0 %v121
      %156 = vmatprep.subr.mxu0 0.0
      %157 = vmatpush1.xpose.msra.mxu0 %v124
      %158 = vmatprep.subr.mxu0 0.0
      %159 = vmatpush1.xpose.msra.mxu0 0.0
      %160 = vmatprep.subr.mxu0 0.0
      %161 = vmatpush1.xpose.msra.mxu0 0.0
      %162 = vmatprep.subr.mxu0 0.0
      %163 = vmatpush1.xpose.msra.mxu0 0.0
      %164 = vmatprep.subr.mxu0 0.0
      %165 = vmatpush1.xpose.msra.mxu0 0.0
      %166 = vmatprep.subr.mxu0 0.0
      %167 = vmatpush1.xpose.msra.mxu0 0.0
      %168 = vmatprep.subr.mxu0 0.0
      %169 = vmatpush1.xpose.msra.mxu0 0.0
      %170 = vmatprep.subr.mxu0 0.0
      %171 = vmatpush1.xpose.msra.mxu0 0.0
      %172 = vmatprep.subr.mxu0 0.0
      %173 = vmatpush1.xpose.msra.mxu0 0.0
      %174 = vmatprep.subr.mxu0 0.0
      %175 = vmatpush1.xpose.msra.mxu0 0.0
      %176 = vmatprep.subr.mxu0 0.0
      %177 = vmatpush1.xpose.msra.mxu0 0.0
      %178 = vmatprep.subr.mxu0 0.0
      %179 = vmatpush1.xpose.msra.mxu0 0.0
      %180 = vmatprep.subr.mxu0 0.0
      %181 = vmatpush1.xpose.msra.mxu0 0.0
      %182 = vmatprep.subr.mxu0 0.0
      %183 = vmatpush1.xpose.msra.mxu0 0.0
      %184 = vmatprep.subr.mxu0 0.0
      %185 = vmatpush1.xpose.msra.mxu0 0.0
      %186 = vmatprep.subr.mxu0 0.0
      %187 = vmatpush1.xpose.msra.mxu0 0.0
      %188 = vmatprep.subr.mxu0 0.0
      %189 = vmatpush1.xpose.msra.mxu0 0.0
      %190 = vmatprep.mubr.f32.mxu0 0.0
      %191 = vmatmul.mubr.f32.gmra.mrb[0].mxu0 %v76
      %v192 = vpop.f32.mrb[0].mxu0
      %v193 = vadd.f32 %v73, %v192
      %v194 = vpop.f32.mrb[0].mxu0
      %195 = vdwg.mxu0
      %196 = vst [vmem:[#allocation3] sm:$0x3] %v193
    $region21: #{tpu_custom_call.1} parent=1 // pred_fallthru
      _
    // Predicated region
    $region22: #{tpu_custom_call.1} parent=1 // pred_check
      _
    $region23: #{tpu_custom_call.1} parent=1 // pred_check_branch
      %198 = sbr.rel (0) target = $region25
    $region24: #{tpu_custom_call.1} parent=1 // pred_region
      %s200 = ssub.s32 32, 32
      %201 = vsyncadd [#allocation4], %s200
      %s203 = sshll.u32 [#allocation3], 4
      %s204 = int_to_ptr.vmem [resolvable:$true] %s203
      %206 = dma.vmem_to_hbm [thread:$0]  %s204, 32, %s3, [#allocation4]
    $region25: #{tpu_custom_call.1} parent=1 // pred_fallthru
      _
    // Predicated region
    $region26: #{tpu_custom_call.1} parent=1 // pred_check
      _
    $region27: #{tpu_custom_call.1} parent=1 // pred_check_branch
      %208 = sbr.rel (0) target = $region29
    $region28: #{tpu_custom_call.1} parent=1 // pred_region
      %209 = dma.done [#allocation4], 32
    $region29: #{tpu_custom_call.1} parent=1 // pred_fallthru
      _
    %210 = vsyncpa [#allocation4], 1

</llo_original>
